<compile_context>
chip_gen: v7x
topology: tpu7x:2x2x1
jax: 0.10.0
libtpu: 0.0.40
codegen_flags: <defaults>
</compile_context>

<pallas_src>
import functools

import jax
import jax.numpy as jnp
from jax.experimental import pallas as pl
from jax.experimental.pallas import tpu as pltpu


_LANES = 128
_MAX_BLOCK_ROWS = 4096   # 4096 x 128 f32 = 2 MiB per input per pipeline buffer


def _aucm_kernel(ab_ref, yp_ref, yt_ref, out_ref, *, n_valid, blocks_per_split):
    """Fold one (block_rows, 128) block into 8 per-lane accumulators (8,8,128)."""
    c = pl.program_id(0)          # row-range split ("parallel", v7x dual-TC)
    i = pl.program_id(1)          # block within the split ("arbitrary")

    a = ab_ref[0]
    b = ab_ref[1]

    @pl.when(i == 0)
    def _init():
        out_ref[...] = jnp.zeros_like(out_ref)

    yp = yp_ref[...].astype(jnp.float32)      # (BR, 128)
    yt = yt_ref[...].astype(jnp.float32)
    br, lanes = yp.shape
    blk_elems = br * lanes

    # Validity mask from the global flat element index.  Covers wrapper pad,
    # the ragged last grid block, and any clamped out-of-range tail block.
    start = (c * blocks_per_split + i) * blk_elems
    rem = n_valid - start                     # may be <= 0 for tail splits
    row = jax.lax.broadcasted_iota(jnp.int32, (br, lanes), 0)
    col = jax.lax.broadcasted_iota(jnp.int32, (br, lanes), 1)
    valid = (row * lanes + col) < rem

    # Invalid slots get label -1 -> neither positive nor negative; every other
    # term is multiplied by posf/negf so padded y_pred values never leak.
    yt = jnp.where(valid, yt, -1.0)
    posf = (yt == 1.0).astype(jnp.float32)
    negf = (yt == 0.0).astype(jnp.float32)

    da = yp - a
    db = yp - b
    da2 = da * da
    db2 = db * db

    nz_a = (da2 != 0.0).astype(jnp.float32)   # nonzero test on the product terms
    nz_b = (db2 != 0.0).astype(jnp.float32)
    nz_p = (yp != 0.0).astype(jnp.float32)

    terms = (
        posf * da2,   # 0: sum((yp-a)^2 * pos)
        negf * db2,   # 1: sum((yp-b)^2 * neg)
        negf * yp,    # 2: sum(yp * neg)
        posf * yp,    # 3: sum(yp * pos)
        posf * nz_a,  # 4: count_nonzero((yp-a)^2 * pos)
        negf * nz_b,  # 5: count_nonzero((yp-b)^2 * neg)
        negf * nz_p,  # 6: count_nonzero(yp * neg)
        posf * nz_p,  # 7: count_nonzero(yp * pos)
    )
    # Row-fold each (BR,128) term to (8,128): the reshape preserves the vreg
    # layout, so the axis-0 sum is pure VPU adds; all XLU cross-lane work is
    # deferred to the tiny wrapper epilogue.
    for k, t in enumerate(terms):
        out_ref[k] += jnp.sum(t.reshape(br // 8, 8, lanes), axis=0)


def _round_up(x, m):
    return ((x + m - 1) // m) * m


@jax.jit
def aucm_loss_v2(y_pred, y_true, a, b, alpha, margin):
    # _check_tensor_shape((-1, 1)) -> flatten.  Keep the caller's floating dtype
    # so a bf16 caller moves only 2 bytes/element through HBM; upcast in-kernel.
    yp = jnp.reshape(y_pred, (-1,))
    yt = jnp.reshape(y_true, (-1,))
    if not jnp.issubdtype(yp.dtype, jnp.floating):
        yp = yp.astype(jnp.float32)
    if not jnp.issubdtype(yt.dtype, jnp.floating):
        yt = yt.astype(jnp.float32)
    n = yp.shape[0]

    # Lane-major (rows, 128) view.  Pad only when N is not already aligned;
    # pad values are irrelevant thanks to the in-kernel index mask.
    rows_needed = pl.cdiv(n, _LANES)
    if rows_needed <= _MAX_BLOCK_ROWS:
        rows = max(16, _round_up(rows_needed, 16))   # single block == full array
        block_rows = rows
    else:
        rows = rows_needed                           # ragged last block is masked
        block_rows = _MAX_BLOCK_ROWS
    pad_to = rows * _LANES
    if pad_to != n:
        # TODO(synk): for huge unaligned N this is still one full-array copy;
        # a fully pad-free path would need a 1-D/Element-indexed layout.
        yp = jnp.pad(yp, (0, pad_to - n))
        yt = jnp.pad(yt, (0, pad_to - n))
    yp2 = yp.reshape(rows, _LANES)
    yt2 = yt.reshape(rows, _LANES)

    total_blocks = pl.cdiv(rows, block_rows)
    splits = 2 if total_blocks >= 2 else 1     # v7x: one row range per TensorCore
    bps = pl.cdiv(total_blocks, splits)

    def data_map(c, i):
        # Clamp so a tail split never produces a fully out-of-range block index;
        # the in-kernel `rem` mask zeroes any re-read data.
        return (jnp.minimum(c * bps + i, total_blocks - 1), 0)

    ab = jnp.stack([jnp.asarray(a, jnp.float32).reshape(()),
                    jnp.asarray(b, jnp.float32).reshape(())])

    kernel = functools.partial(_aucm_kernel, n_valid=n, blocks_per_split=bps)

    bytes_accessed = int(yp2.size * yp2.dtype.itemsize
                         + yt2.size * yt2.dtype.itemsize
                         + splits * 8 * 8 * _LANES * 4)
    cost = pl.CostEstimate(flops=int(34 * rows * _LANES),
                           transcendentals=0,
                           bytes_accessed=bytes_accessed)

    partials = pl.pallas_call(
        kernel,
        out_shape=jax.ShapeDtypeStruct((splits, 8, 8, _LANES), jnp.float32),
        grid=(splits, bps),
        in_specs=[
            pl.BlockSpec(memory_space=pltpu.MemorySpace.SMEM),   # [a, b]
            pl.BlockSpec((block_rows, _LANES), data_map),        # y_pred blocks
            pl.BlockSpec((block_rows, _LANES), data_map),        # y_true blocks
        ],
        out_specs=pl.BlockSpec((None, 8, 8, _LANES), lambda c, i: (c, 0, 0, 0)),
        compiler_params=pltpu.CompilerParams(
            dimension_semantics=("parallel", "arbitrary")),
        cost_estimate=cost,
    )(ab, yp2, yt2)

    # Tiny epilogue: one cross-lane reduction + the scalar loss formula.
    red = jnp.sum(partials, axis=(0, 2, 3))          # (8,)
    m_pos_sq = red[0] / red[4]
    m_neg_sq = red[1] / red[5]
    m_neg = red[2] / red[6]
    m_pos = red[3] / red[7]

    alpha_s = jnp.asarray(alpha, jnp.float32).reshape(())
    margin_s = jnp.asarray(margin, jnp.float32).reshape(())
    loss = (m_pos_sq + m_neg_sq
            + 2.0 * alpha_s * (margin_s + m_neg - m_pos)
            - alpha_s * alpha_s)
    # torch returns shape (1,) (alpha has shape (1,)); keep that.
    return jnp.reshape(loss, (1,))


def _reference(y_pred, y_true, a, b, alpha, margin):
    yp = jnp.reshape(y_pred, (-1, 1)).astype(jnp.float32)
    yt = jnp.reshape(y_true, (-1, 1)).astype(jnp.float32)
    pos = (yt == 1.0).astype(jnp.float32)
    neg = (yt == 0.0).astype(jnp.float32)

    def mean_nz(t):
        return jnp.sum(t) / jnp.sum((t != 0.0).astype(jnp.float32))

    return (mean_nz((yp - a) ** 2 * pos)
            + mean_nz((yp - b) ** 2 * neg)
            + 2.0 * alpha * (margin + mean_nz(yp * neg) - mean_nz(yp * pos))
            - alpha * alpha)


if __name__ == "__main__":
    key = jax.random.PRNGKey(0)
    k1, k2, k3, k4 = jax.random.split(key, 4)

    # --- small case: module defaults (a = b = alpha = zeros(1), margin = 1.0) ---
    batch = 32
    y_pred = jax.nn.sigmoid(jax.random.normal(k1, (batch, 1), dtype=jnp.float32))
    y_true = jax.random.bernoulli(k2, 0.4, (batch, 1)).astype(jnp.float32)
    a = jnp.zeros((1,), jnp.float32)
    b = jnp.zeros((1,), jnp.float32)
    alpha = jnp.zeros((1,), jnp.float32)
    margin = 1.0

    loss = aucm_loss_v2(y_pred, y_true, a, b, alpha, margin)
    jax.block_until_ready(loss)
    ref = _reference(y_pred, y_true, a[0], b[0], alpha[0], margin)
    assert jnp.allclose(loss[0], ref, rtol=2e-5, atol=1e-6), (loss, ref)

    # --- larger ragged case: exercises the multi-block / dual-split / clamped-tail path ---
    n_big = 1_050_001
    yp_big = jax.nn.sigmoid(jax.random.normal(k3, (n_big,), dtype=jnp.float32))
    yt_big = jax.random.bernoulli(k4, 0.3, (n_big,)).astype(jnp.float32)
    a2 = jnp.full((1,), 0.3, jnp.float32)
    b2 = jnp.full((1,), 0.2, jnp.float32)
    al2 = jnp.full((1,), 0.5, jnp.float32)
    loss2 = aucm_loss_v2(yp_big, yt_big, a2, b2, al2, 0.7)
    jax.block_until_ready(loss2)
    ref2 = _reference(yp_big, yt_big, a2[0], b2[0], al2[0], 0.7)
    assert jnp.allclose(loss2[0], ref2, rtol=3e-4, atol=1e-5), (loss2, ref2)

    print("KERNEL_OK")
</pallas_src>

<mosaic_0001>
module attributes {stable_mosaic.version = 11 : i64} {
  func.func @_aucm_kernel(%arg0: i32, %arg1: i32, %arg2: memref<2xf32, #tpu.memory_space<smem>>, %arg3: memref<16x128xf32, #tpu.memory_space<vmem>>, %arg4: memref<16x128xf32, #tpu.memory_space<vmem>>, %arg5: memref<1x8x8x128xf32, #tpu.memory_space<vmem>>) attributes {dimension_semantics = [#tpu.dimension_semantics<parallel>, #tpu.dimension_semantics<arbitrary>], iteration_bounds = array<i64: 1, 1>, scalar_prefetch = 0 : i64, scratch_operands = 0 : i64, tpu.core_type = #tpu.core_type<tc>, window_params = [{transform_indices = @transform_0, window_bounds = array<i64: 2>}, {transform_indices = @transform_1, window_bounds = array<i64: 16, 128>}, {transform_indices = @transform_2, window_bounds = array<i64: 16, 128>}, {transform_indices = @transform_3, window_bounds = array<i64: 1, 8, 8, 128>}]} {
    %c0 = arith.constant 0 : index
    %0 = memref.load %arg2[%c0] : memref<2xf32, #tpu.memory_space<smem>>
    %c1 = arith.constant 1 : index
    %1 = memref.load %arg2[%c1] : memref<2xf32, #tpu.memory_space<smem>>
    %c0_i32 = arith.constant 0 : i32
    %2 = arith.cmpi eq, %arg1, %c0_i32 : i32
    %3 = arith.extui %2 : i1 to i32
    %c0_i32_0 = arith.constant 0 : i32
    %4 = arith.cmpi ne, %3, %c0_i32_0 : i32
    scf.if %4 {
      %cst_76 = arith.constant 0.000000e+00 : f32
      %118 = vector.broadcast %cst_76 : f32 to vector<8x8x128xf32>
      %c0_77 = arith.constant 0 : index
      %c0_78 = arith.constant 0 : index
      %c0_79 = arith.constant 0 : index
      %c0_80 = arith.constant 0 : index
      %119 = vector.load %arg5[%c0_77, %c0_78, %c0_79, %c0_80] : memref<1x8x8x128xf32, #tpu.memory_space<vmem>>, vector<1x8x8x128xf32>
      %120 = vector.shape_cast %119 : vector<1x8x8x128xf32> to vector<8x8x128xf32>
      %121 = vector.shape_cast %118 : vector<8x8x128xf32> to vector<1x8x8x128xf32>
      tpu.vector_store %arg5[%c0_77, %c0_78, %c0_79, %c0_80], %121 {strides = array<i32>} : memref<1x8x8x128xf32, #tpu.memory_space<vmem>>, vector<1x8x8x128xf32>,
    } else {
    }
    %c0_1 = arith.constant 0 : index
    %c0_2 = arith.constant 0 : index
    %5 = vector.load %arg3[%c0_1, %c0_2] : memref<16x128xf32, #tpu.memory_space<vmem>>, vector<16x128xf32>
    %c0_3 = arith.constant 0 : index
    %c0_4 = arith.constant 0 : index
    %6 = vector.load %arg4[%c0_3, %c0_4] : memref<16x128xf32, #tpu.memory_space<vmem>>, vector<16x128xf32>
    %c1_i32 = arith.constant 1 : i32
    %7 = arith.muli %arg0, %c1_i32 : i32
    %8 = arith.addi %7, %arg1 : i32
    %c2048_i32 = arith.constant 2048 : i32
    %9 = arith.muli %8, %c2048_i32 : i32
    %c32_i32 = arith.constant 32 : i32
    %10 = arith.subi %c32_i32, %9 : i32
    %11 = tpu.iota {dimensions = array<i32: 0>} : vector<16x128xi32>
    %12 = tpu.iota {dimensions = array<i32: 1>} : vector<16x128xi32>
    %c128_i32 = arith.constant 128 : i32
    %13 = vector.broadcast %c128_i32 : i32 to vector<16x128xi32>
    %14 = arith.muli %11, %13 : vector<16x128xi32>
    %15 = arith.addi %14, %12 : vector<16x128xi32>
    %16 = vector.broadcast %10 : i32 to vector<16x128xi32>
    %17 = arith.cmpi slt, %15, %16 : vector<16x128xi32>
    %cst = arith.constant -1.000000e+00 : f32
    %18 = vector.broadcast %cst : f32 to vector<16x128xf32>
    %19 = arith.select %17, %6, %18 : vector<16x128xi1>, vector<16x128xf32>
    %cst_5 = arith.constant 1.000000e+00 : f32
    %20 = vector.broadcast %cst_5 : f32 to vector<16x128xf32>
    %21 = arith.cmpf oeq, %19, %20 : vector<16x128xf32>
    %22 = arith.extui %21 : vector<16x128xi1> to vector<16x128xi32>
    %23 = arith.sitofp %22 : vector<16x128xi32> to vector<16x128xf32>
    %cst_6 = arith.constant 0.000000e+00 : f32
    %24 = vector.broadcast %cst_6 : f32 to vector<16x128xf32>
    %25 = arith.cmpf oeq, %19, %24 : vector<16x128xf32>
    %26 = arith.extui %25 : vector<16x128xi1> to vector<16x128xi32>
    %27 = arith.sitofp %26 : vector<16x128xi32> to vector<16x128xf32>
    %28 = vector.broadcast %0 : f32 to vector<16x128xf32>
    %29 = arith.subf %5, %28 : vector<16x128xf32>
    %30 = vector.broadcast %1 : f32 to vector<16x128xf32>
    %31 = arith.subf %5, %30 : vector<16x128xf32>
    %32 = arith.mulf %29, %29 : vector<16x128xf32>
    %33 = arith.mulf %31, %31 : vector<16x128xf32>
    %cst_7 = arith.constant 0.000000e+00 : f32
    %34 = vector.broadcast %cst_7 : f32 to vector<16x128xf32>
    %35 = arith.cmpf one, %32, %34 : vector<16x128xf32>
    %36 = arith.extui %35 : vector<16x128xi1> to vector<16x128xi32>
    %37 = arith.sitofp %36 : vector<16x128xi32> to vector<16x128xf32>
    %cst_8 = arith.constant 0.000000e+00 : f32
    %38 = vector.broadcast %cst_8 : f32 to vector<16x128xf32>
    %39 = arith.cmpf one, %33, %38 : vector<16x128xf32>
    %40 = arith.extui %39 : vector<16x128xi1> to vector<16x128xi32>
    %41 = arith.sitofp %40 : vector<16x128xi32> to vector<16x128xf32>
    %cst_9 = arith.constant 0.000000e+00 : f32
    %42 = vector.broadcast %cst_9 : f32 to vector<16x128xf32>
    %43 = arith.cmpf one, %5, %42 : vector<16x128xf32>
    %44 = arith.extui %43 : vector<16x128xi1> to vector<16x128xi32>
    %45 = arith.sitofp %44 : vector<16x128xi32> to vector<16x128xf32>
    %46 = arith.mulf %23, %32 : vector<16x128xf32>
    %47 = arith.mulf %27, %33 : vector<16x128xf32>
    %48 = arith.mulf %27, %5 : vector<16x128xf32>
    %49 = arith.mulf %23, %5 : vector<16x128xf32>
    %50 = arith.mulf %23, %37 : vector<16x128xf32>
    %51 = arith.mulf %27, %41 : vector<16x128xf32>
    %52 = arith.mulf %27, %45 : vector<16x128xf32>
    %53 = arith.mulf %23, %45 : vector<16x128xf32>
    %c0_10 = arith.constant 0 : index
    %c0_11 = arith.constant 0 : index
    %c0_12 = arith.constant 0 : index
    %c0_13 = arith.constant 0 : index
    %54 = vector.load %arg5[%c0_10, %c0_11, %c0_12, %c0_13] : memref<1x8x8x128xf32, #tpu.memory_space<vmem>>, vector<1x1x8x128xf32>
    %55 = vector.shape_cast %54 : vector<1x1x8x128xf32> to vector<8x128xf32>
    %56 = vector.shape_cast %46 : vector<16x128xf32> to vector<2x8x128xf32>
    %cst_14 = arith.constant dense<0.000000e+00> : vector<8x128xf32>
    %57 = vector.multi_reduction <add>, %56, %cst_14 [0] : vector<2x8x128xf32> to vector<8x128xf32>
    %58 = arith.addf %55, %57 : vector<8x128xf32>
    %c0_15 = arith.constant 0 : index
    %c0_16 = arith.constant 0 : index
    %c0_17 = arith.constant 0 : index
    %c0_18 = arith.constant 0 : index
    %59 = vector.load %arg5[%c0_15, %c0_16, %c0_17, %c0_18] : memref<1x8x8x128xf32, #tpu.memory_space<vmem>>, vector<1x1x8x128xf32>
    %60 = vector.shape_cast %59 : vector<1x1x8x128xf32> to vector<8x128xf32>
    %61 = vector.shape_cast %58 : vector<8x128xf32> to vector<1x1x8x128xf32>
    tpu.vector_store %arg5[%c0_15, %c0_16, %c0_17, %c0_18], %61 {strides = array<i32>} : memref<1x8x8x128xf32, #tpu.memory_space<vmem>>, vector<1x1x8x128xf32>,
    %c0_19 = arith.constant 0 : index
    %c1_20 = arith.constant 1 : index
    %c0_21 = arith.constant 0 : index
    %c0_22 = arith.constant 0 : index
    %62 = vector.load %arg5[%c0_19, %c1_20, %c0_21, %c0_22] : memref<1x8x8x128xf32, #tpu.memory_space<vmem>>, vector<1x1x8x128xf32>
    %63 = vector.shape_cast %62 : vector<1x1x8x128xf32> to vector<8x128xf32>
    %64 = vector.shape_cast %47 : vector<16x128xf32> to vector<2x8x128xf32>
    %cst_23 = arith.constant dense<0.000000e+00> : vector<8x128xf32>
    %65 = vector.multi_reduction <add>, %64, %cst_23 [0] : vector<2x8x128xf32> to vector<8x128xf32>
    %66 = arith.addf %63, %65 : vector<8x128xf32>
    %c0_24 = arith.constant 0 : index
    %c1_25 = arith.constant 1 : index
    %c0_26 = arith.constant 0 : index
    %c0_27 = arith.constant 0 : index
    %67 = vector.load %arg5[%c0_24, %c1_25, %c0_26, %c0_27] : memref<1x8x8x128xf32, #tpu.memory_space<vmem>>, vector<1x1x8x128xf32>
    %68 = vector.shape_cast %67 : vector<1x1x8x128xf32> to vector<8x128xf32>
    %69 = vector.shape_cast %66 : vector<8x128xf32> to vector<1x1x8x128xf32>
    tpu.vector_store %arg5[%c0_24, %c1_25, %c0_26, %c0_27], %69 {strides = array<i32>} : memref<1x8x8x128xf32, #tpu.memory_space<vmem>>, vector<1x1x8x128xf32>,
    %c0_28 = arith.constant 0 : index
    %c2 = arith.constant 2 : index
    %c0_29 = arith.constant 0 : index
    %c0_30 = arith.constant 0 : index
    %70 = vector.load %arg5[%c0_28, %c2, %c0_29, %c0_30] : memref<1x8x8x128xf32, #tpu.memory_space<vmem>>, vector<1x1x8x128xf32>
    %71 = vector.shape_cast %70 : vector<1x1x8x128xf32> to vector<8x128xf32>
    %72 = vector.shape_cast %48 : vector<16x128xf32> to vector<2x8x128xf32>
    %cst_31 = arith.constant dense<0.000000e+00> : vector<8x128xf32>
    %73 = vector.multi_reduction <add>, %72, %cst_31 [0] : vector<2x8x128xf32> to vector<8x128xf32>
    %74 = arith.addf %71, %73 : vector<8x128xf32>
    %c0_32 = arith.constant 0 : index
    %c2_33 = arith.constant 2 : index
    %c0_34 = arith.constant 0 : index
    %c0_35 = arith.constant 0 : index
    %75 = vector.load %arg5[%c0_32, %c2_33, %c0_34, %c0_35] : memref<1x8x8x128xf32, #tpu.memory_space<vmem>>, vector<1x1x8x128xf32>
    %76 = vector.shape_cast %75 : vector<1x1x8x128xf32> to vector<8x128xf32>
    %77 = vector.shape_cast %74 : vector<8x128xf32> to vector<1x1x8x128xf32>
    tpu.vector_store %arg5[%c0_32, %c2_33, %c0_34, %c0_35], %77 {strides = array<i32>} : memref<1x8x8x128xf32, #tpu.memory_space<vmem>>, vector<1x1x8x128xf32>,
    %c0_36 = arith.constant 0 : index
    %c3 = arith.constant 3 : index
    %c0_37 = arith.constant 0 : index
    %c0_38 = arith.constant 0 : index
    %78 = vector.load %arg5[%c0_36, %c3, %c0_37, %c0_38] : memref<1x8x8x128xf32, #tpu.memory_space<vmem>>, vector<1x1x8x128xf32>
    %79 = vector.shape_cast %78 : vector<1x1x8x128xf32> to vector<8x128xf32>
    %80 = vector.shape_cast %49 : vector<16x128xf32> to vector<2x8x128xf32>
    %cst_39 = arith.constant dense<0.000000e+00> : vector<8x128xf32>
    %81 = vector.multi_reduction <add>, %80, %cst_39 [0] : vector<2x8x128xf32> to vector<8x128xf32>
    %82 = arith.addf %79, %81 : vector<8x128xf32>
    %c0_40 = arith.constant 0 : index
    %c3_41 = arith.constant 3 : index
    %c0_42 = arith.constant 0 : index
    %c0_43 = arith.constant 0 : index
    %83 = vector.load %arg5[%c0_40, %c3_41, %c0_42, %c0_43] : memref<1x8x8x128xf32, #tpu.memory_space<vmem>>, vector<1x1x8x128xf32>
    %84 = vector.shape_cast %83 : vector<1x1x8x128xf32> to vector<8x128xf32>
    %85 = vector.shape_cast %82 : vector<8x128xf32> to vector<1x1x8x128xf32>
    tpu.vector_store %arg5[%c0_40, %c3_41, %c0_42, %c0_43], %85 {strides = array<i32>} : memref<1x8x8x128xf32, #tpu.memory_space<vmem>>, vector<1x1x8x128xf32>,
    %c0_44 = arith.constant 0 : index
    %c4 = arith.constant 4 : index
    %c0_45 = arith.constant 0 : index
    %c0_46 = arith.constant 0 : index
    %86 = vector.load %arg5[%c0_44, %c4, %c0_45, %c0_46] : memref<1x8x8x128xf32, #tpu.memory_space<vmem>>, vector<1x1x8x128xf32>
    %87 = vector.shape_cast %86 : vector<1x1x8x128xf32> to vector<8x128xf32>
    %88 = vector.shape_cast %50 : vector<16x128xf32> to vector<2x8x128xf32>
    %cst_47 = arith.constant dense<0.000000e+00> : vector<8x128xf32>
    %89 = vector.multi_reduction <add>, %88, %cst_47 [0] : vector<2x8x128xf32> to vector<8x128xf32>
    %90 = arith.addf %87, %89 : vector<8x128xf32>
    %c0_48 = arith.constant 0 : index
    %c4_49 = arith.constant 4 : index
    %c0_50 = arith.constant 0 : index
    %c0_51 = arith.constant 0 : index
    %91 = vector.load %arg5[%c0_48, %c4_49, %c0_50, %c0_51] : memref<1x8x8x128xf32, #tpu.memory_space<vmem>>, vector<1x1x8x128xf32>
    %92 = vector.shape_cast %91 : vector<1x1x8x128xf32> to vector<8x128xf32>
    %93 = vector.shape_cast %90 : vector<8x128xf32> to vector<1x1x8x128xf32>
    tpu.vector_store %arg5[%c0_48, %c4_49, %c0_50, %c0_51], %93 {strides = array<i32>} : memref<1x8x8x128xf32, #tpu.memory_space<vmem>>, vector<1x1x8x128xf32>,
    %c0_52 = arith.constant 0 : index
    %c5 = arith.constant 5 : index
    %c0_53 = arith.constant 0 : index
    %c0_54 = arith.constant 0 : index
    %94 = vector.load %arg5[%c0_52, %c5, %c0_53, %c0_54] : memref<1x8x8x128xf32, #tpu.memory_space<vmem>>, vector<1x1x8x128xf32>
    %95 = vector.shape_cast %94 : vector<1x1x8x128xf32> to vector<8x128xf32>
    %96 = vector.shape_cast %51 : vector<16x128xf32> to vector<2x8x128xf32>
    %cst_55 = arith.constant dense<0.000000e+00> : vector<8x128xf32>
    %97 = vector.multi_reduction <add>, %96, %cst_55 [0] : vector<2x8x128xf32> to vector<8x128xf32>
    %98 = arith.addf %95, %97 : vector<8x128xf32>
    %c0_56 = arith.constant 0 : index
    %c5_57 = arith.constant 5 : index
    %c0_58 = arith.constant 0 : index
    %c0_59 = arith.constant 0 : index
    %99 = vector.load %arg5[%c0_56, %c5_57, %c0_58, %c0_59] : memref<1x8x8x128xf32, #tpu.memory_space<vmem>>, vector<1x1x8x128xf32>
    %100 = vector.shape_cast %99 : vector<1x1x8x128xf32> to vector<8x128xf32>
    %101 = vector.shape_cast %98 : vector<8x128xf32> to vector<1x1x8x128xf32>
    tpu.vector_store %arg5[%c0_56, %c5_57, %c0_58, %c0_59], %101 {strides = array<i32>} : memref<1x8x8x128xf32, #tpu.memory_space<vmem>>, vector<1x1x8x128xf32>,
    %c0_60 = arith.constant 0 : index
    %c6 = arith.constant 6 : index
    %c0_61 = arith.constant 0 : index
    %c0_62 = arith.constant 0 : index
    %102 = vector.load %arg5[%c0_60, %c6, %c0_61, %c0_62] : memref<1x8x8x128xf32, #tpu.memory_space<vmem>>, vector<1x1x8x128xf32>
    %103 = vector.shape_cast %102 : vector<1x1x8x128xf32> to vector<8x128xf32>
    %104 = vector.shape_cast %52 : vector<16x128xf32> to vector<2x8x128xf32>
    %cst_63 = arith.constant dense<0.000000e+00> : vector<8x128xf32>
    %105 = vector.multi_reduction <add>, %104, %cst_63 [0] : vector<2x8x128xf32> to vector<8x128xf32>
    %106 = arith.addf %103, %105 : vector<8x128xf32>
    %c0_64 = arith.constant 0 : index
    %c6_65 = arith.constant 6 : index
    %c0_66 = arith.constant 0 : index
    %c0_67 = arith.constant 0 : index
    %107 = vector.load %arg5[%c0_64, %c6_65, %c0_66, %c0_67] : memref<1x8x8x128xf32, #tpu.memory_space<vmem>>, vector<1x1x8x128xf32>
    %108 = vector.shape_cast %107 : vector<1x1x8x128xf32> to vector<8x128xf32>
    %109 = vector.shape_cast %106 : vector<8x128xf32> to vector<1x1x8x128xf32>
    tpu.vector_store %arg5[%c0_64, %c6_65, %c0_66, %c0_67], %109 {strides = array<i32>} : memref<1x8x8x128xf32, #tpu.memory_space<vmem>>, vector<1x1x8x128xf32>,
    %c0_68 = arith.constant 0 : index
    %c7 = arith.constant 7 : index
    %c0_69 = arith.constant 0 : index
    %c0_70 = arith.constant 0 : index
    %110 = vector.load %arg5[%c0_68, %c7, %c0_69, %c0_70] : memref<1x8x8x128xf32, #tpu.memory_space<vmem>>, vector<1x1x8x128xf32>
    %111 = vector.shape_cast %110 : vector<1x1x8x128xf32> to vector<8x128xf32>
    %112 = vector.shape_cast %53 : vector<16x128xf32> to vector<2x8x128xf32>
    %cst_71 = arith.constant dense<0.000000e+00> : vector<8x128xf32>
    %113 = vector.multi_reduction <add>, %112, %cst_71 [0] : vector<2x8x128xf32> to vector<8x128xf32>
    %114 = arith.addf %111, %113 : vector<8x128xf32>
    %c0_72 = arith.constant 0 : index
    %c7_73 = arith.constant 7 : index
    %c0_74 = arith.constant 0 : index
    %c0_75 = arith.constant 0 : index
    %115 = vector.load %arg5[%c0_72, %c7_73, %c0_74, %c0_75] : memref<1x8x8x128xf32, #tpu.memory_space<vmem>>, vector<1x1x8x128xf32>
    %116 = vector.shape_cast %115 : vector<1x1x8x128xf32> to vector<8x128xf32>
    %117 = vector.shape_cast %114 : vector<8x128xf32> to vector<1x1x8x128xf32>
    tpu.vector_store %arg5[%c0_72, %c7_73, %c0_74, %c0_75], %117 {strides = array<i32>} : memref<1x8x8x128xf32, #tpu.memory_space<vmem>>, vector<1x1x8x128xf32>,
    return
  }
  func.func @transform_0(%arg0: i32, %arg1: i32) -> i32 {
    %c0_i32 = arith.constant 0 : i32
    %c0_i32_0 = arith.constant 0 : i32
    return %c0_i32 : i32
  }
  func.func @transform_1(%arg0: i32, %arg1: i32) -> (i32, i32) {
    %c1_i32 = arith.constant 1 : i32
    %0 = arith.muli %arg0, %c1_i32 : i32
    %1 = arith.addi %0, %arg1 : i32
    %c0_i32 = arith.constant 0 : i32
    %2 = arith.minsi %1, %c0_i32 : i32
    %c0_i32_0 = arith.constant 0 : i32
    %c0_i32_1 = arith.constant 0 : i32
    return %2, %c0_i32_0 : i32, i32
  }
  func.func @transform_2(%arg0: i32, %arg1: i32) -> (i32, i32) {
    %c1_i32 = arith.constant 1 : i32
    %0 = arith.muli %arg0, %c1_i32 : i32
    %1 = arith.addi %0, %arg1 : i32
    %c0_i32 = arith.constant 0 : i32
    %2 = arith.minsi %1, %c0_i32 : i32
    %c0_i32_0 = arith.constant 0 : i32
    %c0_i32_1 = arith.constant 0 : i32
    return %2, %c0_i32_0 : i32, i32
  }
  func.func @transform_3(%arg0: i32, %arg1: i32) -> (i32, i32, i32, i32) {
    %c0_i32 = arith.constant 0 : i32
    %c0_i32_0 = arith.constant 0 : i32
    %c0_i32_1 = arith.constant 0 : i32
    %c0_i32_2 = arith.constant 0 : i32
    return %arg0, %c0_i32, %c0_i32_0, %c0_i32_1 : i32, i32, i32, i32
  }
}

</mosaic_0001>

<llo_original>
// kernel: aucm_loss_v2.1
$region0: #{aucm_loss_v2.1}
  #allocation0 [shape = 'u32[]', space=smem, size = 0x4, offset = 0x4, fixed_abs, tag = 'smem constant byte address 0x4 - core index']
  #allocation1 [shape = 'u32[144,128]{1,0:T(1,128)}', space=vmem, size = 0x12000, scoped, tag = 'internal scratch']
  %s0 = inlined_call_operand.vmem [shape: f32[2], index: 0, kind: input, shape index: {}]
  %s1 = inlined_call_operand.vmem [shape: f32[16,128], index: 1, kind: input, shape index: {}]
  %s2 = inlined_call_operand.vmem [shape: f32[16,128], index: 2, kind: input, shape index: {}]
  %s3 = inlined_call_operand.vmem [shape: f32[1,8,8,128], index: 3, kind: output, shape index: {}]
  %s4 = sld [smem:[#allocation0]]
  $region30: #{aucm_loss_v2.1} parent=0
    _
  %s6 = ssub.s32 1, %s4
  %s7 = scalar_select 0, %s6, %s4
  $region1: #{aucm_loss_v2.1} parent=0
    #allocation2 [shape = 'u8[512]{0}', space=smem, size = 0x200, scoped, tag = 'input window, operand 0, single buffered']
    #allocation3 [shape = 's32[1]{0}', space=sflag, size = 0x4, scoped, tag = 'scoped memory for aucm_loss_v2.1']
    %8 = vsyncpa [#allocation3], 0
    // Predicated region
    $region2: #{aucm_loss_v2.1} parent=1 // pred_check
      _
    $region3: #{aucm_loss_v2.1} parent=1 // pred_check_branch
      %10 = sbr.rel (0) target = $region5
    $region4: #{aucm_loss_v2.1} parent=1 // pred_region
      %s12 = ssub.s32 16, 16
      %13 = vsyncadd [#allocation3], %s12
      %s15 = sshll.u32 %s0, 4
      %s16 = int_to_ptr.vmem [resolvable:$true] %s15
      %18 = dma.vmem_to_smem %s16, 16, [#allocation2], [#allocation3]
    $region5: #{aucm_loss_v2.1} parent=1 // pred_fallthru
      _
    // Predicated region
    $region6: #{aucm_loss_v2.1} parent=1 // pred_check
      _
    $region7: #{aucm_loss_v2.1} parent=1 // pred_check_branch
      %20 = sbr.rel (0) target = $region9
    $region8: #{aucm_loss_v2.1} parent=1 // pred_region
      %s21 = sadd.s32 0, 0
      %p22 = scmp.lt.s32.totalorder %s21, 0
      %s23 = scalar_select %p22, %s21, 0
      %s24 = smul.u32 2, %s23
      %p25 = scmp.lt.s32.totalorder %s24, 1
      %s26 = scalar_select %p25, %s24, 1
      %s27 = smul.addr %s26, 8
      %s28 = scalar_lea.vmem %s1, %s27
      %s29 = sadd.s32 0, 0
      %p30 = scmp.lt.s32.totalorder %s29, 0
      %s31 = scalar_select %p30, %s29, 0
      %s32 = smul.u32 2, %s31
    $region9: #{aucm_loss_v2.1} parent=1 // pred_fallthru
      _
    // Predicated region
    $region10: #{aucm_loss_v2.1} parent=1 // pred_check
      _
    $region11: #{aucm_loss_v2.1} parent=1 // pred_check_branch
      %34 = sbr.rel (0) target = $region13
    $region12: #{aucm_loss_v2.1} parent=1 // pred_region
      %s35 = sadd.s32 0, 0
      %p36 = scmp.lt.s32.totalorder %s35, 0
      %s37 = scalar_select %p36, %s35, 0
      %s38 = smul.u32 2, %s37
      %p39 = scmp.lt.s32.totalorder %s38, 1
      %s40 = scalar_select %p39, %s38, 1
      %s41 = smul.addr %s40, 8
      %s42 = scalar_lea.vmem %s2, %s41
      %s43 = sadd.s32 0, 0
      %p44 = scmp.lt.s32.totalorder %s43, 0
      %s45 = scalar_select %p44, %s43, 0
      %s46 = smul.u32 2, %s45
    $region13: #{aucm_loss_v2.1} parent=1 // pred_fallthru
      _
    // Predicated region
    $region14: #{aucm_loss_v2.1} parent=1 // pred_check
      _
    $region15: #{aucm_loss_v2.1} parent=1 // pred_check_branch
      %48 = sbr.rel (0) target = $region17
    $region16: #{aucm_loss_v2.1} parent=1 // pred_region
      %49 = dma.done [#allocation3], 16
    $region17: #{aucm_loss_v2.1} parent=1 // pred_fallthru
      _
    %50 = sfence
    %s51 = sadd.s32 0, 0
    %p52 = scmp.lt.s32.totalorder %s51, 0
    %s53 = scalar_select %p52, %s51, 0
    %s54 = smul.u32 2, %s53
    %p55 = scmp.lt.s32.totalorder %s54, 1
    %s56 = scalar_select %p55, %s54, 1
    %s57 = smul.addr %s56, 8
    %s58 = scalar_lea.vmem %s1, %s57
    %s59 = sadd.s32 0, 0
    %p60 = scmp.lt.s32.totalorder %s59, 0
    %s61 = scalar_select %p60, %s59, 0
    %s62 = smul.u32 2, %s61
    %p63 = scmp.lt.s32.totalorder %s62, 1
    %s64 = scalar_select %p63, %s62, 1
    %s65 = smul.addr %s64, 8
    %s66 = scalar_lea.vmem %s2, %s65
    %s67 = sadd.s32 0, 0
    %p68 = scmp.lt.s32.totalorder %s67, 0
    %s69 = scalar_select %p68, %s67, 0
    %s70 = smul.u32 2, %s69
    %p71 = scmp.lt.s32.totalorder %s70, 1
    %s72 = scalar_select %p71, %s70, 1
    %s73 = smul.addr %s72, 8
    %s74 = scalar_lea.vmem %s1, %s73
    %s75 = sadd.s32 0, 0
    %p76 = scmp.lt.s32.totalorder %s75, 0
    %s77 = scalar_select %p76, %s75, 0
    %s78 = smul.u32 2, %s77
    %s79 = sadd.s32 0, 0
    %p80 = scmp.lt.s32.totalorder %s79, 0
    %s81 = scalar_select %p80, %s79, 0
    %s82 = smul.u32 2, %s81
    %p83 = scmp.lt.s32.totalorder %s82, 1
    %s84 = scalar_select %p83, %s82, 1
    %s85 = smul.addr %s84, 8
    %s86 = scalar_lea.vmem %s2, %s85
    %s87 = sadd.s32 0, 0
    %p88 = scmp.lt.s32.totalorder %s87, 0
    %s89 = scalar_select %p88, %s87, 0
    %s90 = smul.u32 2, %s89
    %s91 = sld [smem:[#allocation2]]
    %s92 = sld [smem:[#allocation2 + $0x1]]
    %p93 = scmp.eq.s32.totalorder 0, 0
    // Predicated region
    $region18: #{aucm_loss_v2.1} parent=1 // pred_check
      %p94 = pneg %p93
    $region19: #{aucm_loss_v2.1} parent=1 // pred_check_branch
      %96 = sbr.rel (%p94) target = $region21
    $region20: #{aucm_loss_v2.1} parent=1 // pred_region
      %97 = vst [vmem:[%s3] sm:$0xff] 0.0
      %98 = vst [vmem:[%s3 + $0x8] sm:$0xff] 0.0
      %99 = vst [vmem:[%s3 + $0x10] sm:$0xff] 0.0
      %100 = vst [vmem:[%s3 + $0x18] sm:$0xff] 0.0
      %101 = vst [vmem:[%s3 + $0x20] sm:$0xff] 0.0
      %102 = vst [vmem:[%s3 + $0x28] sm:$0xff] 0.0
      %103 = vst [vmem:[%s3 + $0x30] sm:$0xff] 0.0
      %104 = vst [vmem:[%s3 + $0x38] sm:$0xff] 0.0
    $region21: #{aucm_loss_v2.1} parent=1 // pred_fallthru
      _
    %v105 = vld [vmem:[%s74] sm:$0xff]
    %v106 = vld [vmem:[%s74 + $0x8] sm:$0xff]
    %v107 = vld [vmem:[%s86] sm:$0xff]
    %v108 = vld [vmem:[%s86 + $0x8] sm:$0xff]
    %s109 = sadd.s32 0, 0
    %s110 = smul.u32 %s109, 2048
    %s111 = ssub.s32 32, %s110
    %v112 = vlaneseq
    %v113 = vshrl.u32 %v112, 7
    %v114 = vadd.s32 %v113, 8
    %v115 = vlaneseq
    %v116 = vand.u32 %v115, 127
    %v117 = vmul.u32 %v113, 128
    %v118 = vmul.u32 %v114, 128
    %v119 = vadd.s32 %v117, %v116
    %v120 = vadd.s32 %v118, %v116
    %v121 = vstv %s111
    %vm122 = vcmp.lt.s32.totalorder %v119, %v121
    %vm123 = vcmp.lt.s32.totalorder %v120, %v121
    %v124 = vsel %vm122, %v107, -1.0
    %v125 = vsel %vm123, %v108, -1.0
    %vm126 = vcmp.eq.f32.partialorder %v124, 1.0
    %vm127 = vcmp.eq.f32.partialorder %v125, 1.0
    %v128 = vsel %vm126, 1, 0
    %v129 = vsel %vm127, 1, 0
    %v130 = vcvt.s32.f32 %v128
    %v131 = vcvt.s32.f32 %v129
    %vm132 = vcmp.eq.f32.partialorder %v124, 0.0
    %vm133 = vcmp.eq.f32.partialorder %v125, 0.0
    %v134 = vsel %vm132, 1, 0
    %v135 = vsel %vm133, 1, 0
    %v136 = vcvt.s32.f32 %v134
    %v137 = vcvt.s32.f32 %v135
    %v138 = vstv %s91
    %v139 = vsub.f32 %v105, %v138
    %v140 = vsub.f32 %v106, %v138
    %v141 = vstv %s92
    %v142 = vsub.f32 %v105, %v141
    %v143 = vsub.f32 %v106, %v141
    %v144 = vmul.f32 %v139, %v139
    %v145 = vmul.f32 %v140, %v140
    %v146 = vmul.f32 %v142, %v142
    %v147 = vmul.f32 %v143, %v143
    %vm148 = vcmp.ne.f32.partialorder %v144, 0.0
    %vm149 = vcmp.ne.f32.partialorder %v145, 0.0
    %v150 = vsel %vm148, 1, 0
    %v151 = vsel %vm149, 1, 0
    %v152 = vcvt.s32.f32 %v150
    %v153 = vcvt.s32.f32 %v151
    %vm154 = vcmp.ne.f32.partialorder %v146, 0.0
    %vm155 = vcmp.ne.f32.partialorder %v147, 0.0
    %v156 = vsel %vm154, 1, 0
    %v157 = vsel %vm155, 1, 0
    %v158 = vcvt.s32.f32 %v156
    %v159 = vcvt.s32.f32 %v157
    %vm160 = vcmp.ne.f32.partialorder %v105, 0.0
    %vm161 = vcmp.ne.f32.partialorder %v106, 0.0
    %v162 = vsel %vm160, 1, 0
    %v163 = vsel %vm161, 1, 0
    %v164 = vcvt.s32.f32 %v162
    %v165 = vcvt.s32.f32 %v163
    %v166 = vmul.f32 %v130, %v144
    %v167 = vmul.f32 %v131, %v145
    %v168 = vmul.f32 %v136, %v146
    %v169 = vmul.f32 %v137, %v147
    %v170 = vmul.f32 %v136, %v105
    %v171 = vmul.f32 %v137, %v106
    %v172 = vmul.f32 %v130, %v105
    %v173 = vmul.f32 %v131, %v106
    %v174 = vmul.f32 %v130, %v152
    %v175 = vmul.f32 %v131, %v153
    %v176 = vmul.f32 %v136, %v158
    %v177 = vmul.f32 %v137, %v159
    %v178 = vmul.f32 %v136, %v164
    %v179 = vmul.f32 %v137, %v165
    %v180 = vmul.f32 %v130, %v164
    %v181 = vmul.f32 %v131, %v165
    %v182 = vld [vmem:[%s3] sm:$0xff]
    %v183 = vadd.f32 %v166, %v167
    %v184 = vadd.f32 %v182, %v183
    %185 = vst [vmem:[%s3] sm:$0xff] %v184
    %s186 = scalar_lea.vmem %s3, 8
    %v187 = vld [vmem:[%s186] sm:$0xff]
    %v188 = vadd.f32 %v168, %v169
    %v189 = vadd.f32 %v187, %v188
    %190 = vst [vmem:[%s186] sm:$0xff] %v189
    %s191 = scalar_lea.vmem %s3, 16
    %v192 = vld [vmem:[%s191] sm:$0xff]
    %v193 = vadd.f32 %v170, %v171
    %v194 = vadd.f32 %v192, %v193
    %195 = vst [vmem:[%s191] sm:$0xff] %v194
    %s196 = scalar_lea.vmem %s3, 24
    %v197 = vld [vmem:[%s196] sm:$0xff]
    %v198 = vadd.f32 %v172, %v173
    %v199 = vadd.f32 %v197, %v198
    %200 = vst [vmem:[%s196] sm:$0xff] %v199
    %s201 = scalar_lea.vmem %s3, 32
    %v202 = vld [vmem:[%s201] sm:$0xff]
    %v203 = vadd.f32 %v174, %v175
    %v204 = vadd.f32 %v202, %v203
    %205 = vst [vmem:[%s201] sm:$0xff] %v204
    %s206 = scalar_lea.vmem %s3, 40
    %v207 = vld [vmem:[%s206] sm:$0xff]
    %v208 = vadd.f32 %v176, %v177
    %v209 = vadd.f32 %v207, %v208
    %210 = vst [vmem:[%s206] sm:$0xff] %v209
    %s211 = scalar_lea.vmem %s3, 48
    %v212 = vld [vmem:[%s211] sm:$0xff]
    %v213 = vadd.f32 %v178, %v179
    %v214 = vadd.f32 %v212, %v213
    %215 = vst [vmem:[%s211] sm:$0xff] %v214
    %s216 = scalar_lea.vmem %s3, 56
    %v217 = vld [vmem:[%s216] sm:$0xff]
    %v218 = vadd.f32 %v180, %v181
    %v219 = vadd.f32 %v217, %v218
    %220 = vst [vmem:[%s216] sm:$0xff] %v219
    // Predicated region
    $region22: #{aucm_loss_v2.1} parent=1 // pred_check
      _
    $region23: #{aucm_loss_v2.1} parent=1 // pred_check_branch
      %222 = sbr.rel (0) target = $region25
    $region24: #{aucm_loss_v2.1} parent=1 // pred_region
      _
    $region25: #{aucm_loss_v2.1} parent=1 // pred_fallthru
      _
    // Predicated region
    $region26: #{aucm_loss_v2.1} parent=1 // pred_check
      _
    $region27: #{aucm_loss_v2.1} parent=1 // pred_check_branch
      %224 = sbr.rel (0) target = $region29
    $region28: #{aucm_loss_v2.1} parent=1 // pred_region
      _
    $region29: #{aucm_loss_v2.1} parent=1 // pred_fallthru
      _
    %225 = vsyncpa [#allocation3], 1

</llo_original>
